<compile_context>
chip_gen: v5e
topology: v5e:2x2
jax: 0.10.0
libtpu: 0.0.40
codegen_flags: <defaults>
</compile_context>

<pallas_src>
import jax
import jax.numpy as jnp
from jax import lax
from jax.experimental import pallas as pl
from jax.experimental.pallas import tpu as pltpu

BN_EPS = 1e-5


# ----------------------------------------------------------------------------
# Kernel: pure VPU, fully unrolled tiny channel-mixing network.
#   p_ref : SMEM (23,) f32             packed fused weights/biases
#   x_ref : VMEM (BN, 2, TS, 128) f32  two input channels, lane-dense
#   o_ref : VMEM (BN, 1, TS, 128) f32  single output channel, lane-dense
# ----------------------------------------------------------------------------
def cade_kernel(p_ref, x_ref, o_ref):
    # Direct slab indexing: two clean (BN, TS, 128) loads, no (BN,2,TS,128)
    # value intermediate.
    x0 = x_ref[:, 0, :, :]
    x1 = x_ref[:, 1, :, :]

    # layer1: fused Conv1d(2->2,k=1)+BN, then ReLU
    h10 = jnp.maximum(p_ref[0] * x0 + p_ref[1] * x1 + p_ref[2], 0.0)
    h11 = jnp.maximum(p_ref[3] * x0 + p_ref[4] * x1 + p_ref[5], 0.0)

    # layer2 (fused Conv1d(2->4,k=1)+BN+ReLU) folded straight into the layer5
    # (Conv1d(4->1,k=1)) accumulation to minimize live (TS,128) intermediates.
    acc = p_ref[18] * jnp.maximum(p_ref[6] * h10 + p_ref[7] * h11 + p_ref[8], 0.0)
    acc = acc + p_ref[19] * jnp.maximum(p_ref[9] * h10 + p_ref[10] * h11 + p_ref[11], 0.0)
    acc = acc + p_ref[20] * jnp.maximum(p_ref[12] * h10 + p_ref[13] * h11 + p_ref[14], 0.0)
    acc = acc + p_ref[21] * jnp.maximum(p_ref[15] * h10 + p_ref[16] * h11 + p_ref[17], 0.0)

    o_ref[:, 0, :, :] = acc + p_ref[22]


# ----------------------------------------------------------------------------
# Parameter handling
# ----------------------------------------------------------------------------
def init_params(key):
    ks = jax.random.split(key, 14)
    p = {}
    # Conv1d weights are (out_ch, in_ch) after dropping the size-1 kernel dim.
    p["w1"] = 0.3 * jax.random.normal(ks[0], (2, 2), jnp.float32)
    p["b1"] = 0.1 * jax.random.normal(ks[1], (2,), jnp.float32)
    p["g1"] = 1.0 + 0.1 * jax.random.normal(ks[2], (2,), jnp.float32)
    p["be1"] = 0.05 * jax.random.normal(ks[3], (2,), jnp.float32)
    p["rm1"] = 0.02 * jax.random.normal(ks[4], (2,), jnp.float32)
    p["rv1"] = 1.0 + 0.1 * jnp.abs(jax.random.normal(ks[5], (2,), jnp.float32))

    p["w2"] = 0.3 * jax.random.normal(ks[6], (4, 2), jnp.float32)
    p["b2"] = 0.1 * jax.random.normal(ks[7], (4,), jnp.float32)
    p["g2"] = 1.0 + 0.1 * jax.random.normal(ks[8], (4,), jnp.float32)
    p["be2"] = 0.05 * jax.random.normal(ks[9], (4,), jnp.float32)
    p["rm2"] = 0.02 * jax.random.normal(ks[10], (4,), jnp.float32)
    p["rv2"] = 1.0 + 0.1 * jnp.abs(jax.random.normal(ks[11], (4,), jnp.float32))

    p["w5"] = 0.3 * jax.random.normal(ks[12], (1, 4), jnp.float32)
    p["b5"] = 0.1 * jax.random.normal(ks[13], (1,), jnp.float32)
    return p


def _fold_bn(w, b, g, be, rm, rv, eps=BN_EPS):
    """Fold eval-mode BatchNorm into a 1x1-conv weight/bias."""
    s = g * lax.rsqrt(rv + eps)          # (out,)
    return w * s[:, None], (b - rm) * s + be


def pack_params(p):
    """Pack fused weights/biases into a flat (23,) f32 vector for SMEM."""
    w1, b1 = _fold_bn(p["w1"], p["b1"], p["g1"], p["be1"], p["rm1"], p["rv1"])
    w2, b2 = _fold_bn(p["w2"], p["b2"], p["g2"], p["be2"], p["rm2"], p["rv2"])
    w5, b5 = p["w5"], p["b5"]
    parts = []
    for o in range(2):                    # indices 0..5
        parts += [w1[o, 0], w1[o, 1], b1[o]]
    for o in range(4):                    # indices 6..17
        parts += [w2[o, 0], w2[o, 1], b2[o]]
    parts += [w5[0, 0], w5[0, 1], w5[0, 2], w5[0, 3], b5[0]]   # indices 18..22
    return jnp.stack(parts).astype(jnp.float32)


def _round_up(a, b):
    return (a + b - 1) // b * b


def _choose_tiles(N, nl, max_rows=2048, min_steps=4):
    """Pick (bn, ts): batch block and sublane-row tile along the nl axis.

    Targets ~max_rows*128 positions per grid step (amortizes the ~0.35us/step
    overhead), blocks over N first for small-L/large-N shapes, and then shrinks
    the tile until there are at least `min_steps` grid steps so both v7x
    TensorCores get parallel work.  Never produces a block dim larger than the
    corresponding array dim.
    """
    max_rows = max(8, (max_rows // 8) * 8)
    if nl >= max_rows:
        ts = max_rows                                  # multiple of 8, <= nl
        bn = 1
    else:
        ts = nl                                        # full nl extent (always legal)
        bn = max(1, min(N, max_rows // max(ts, 1)))

    def n_steps(bn_, ts_):
        return pl.cdiv(N, bn_) * pl.cdiv(nl, ts_)

    while n_steps(bn, ts) < min_steps:
        if bn > 1:
            bn = (bn + 1) // 2
        elif ts > 8:
            ts = max(8, _round_up(pl.cdiv(ts, 2), 8))  # stays <= nl, multiple of 8
        else:
            break
    return bn, ts


# ----------------------------------------------------------------------------
# Wrapper
# ----------------------------------------------------------------------------
def cade_forward(x_ncl, params, max_sublane_rows=2048):
    """x_ncl: (N, 2, L) float32 -> (N*L,) float32 (matches out.view(-1))."""
    N, C, L = x_ncl.shape
    assert C == 2
    x = x_ncl.astype(jnp.float32)

    packed = pack_params(params)                       # (23,) f32 -> SMEM

    # Pad L only to a multiple of 128 (needed for the free, contiguous
    # NCL -> (N, 2, nl, 128) reshape).  No padding up to a full tile: partial
    # trailing grid blocks handle the remainder along nl (and along N).
    l_pad = _round_up(L, 128)
    if l_pad != L:
        x = jnp.pad(x, ((0, 0), (0, 0), (0, l_pad - L)))
    nl = l_pad // 128
    x4d = x.reshape(N, 2, nl, 128)

    bn, ts = _choose_tiles(N, nl, max_rows=max_sublane_rows)
    grid = (pl.cdiv(N, bn), pl.cdiv(nl, ts))

    # ~38 VPU ops per position; 12 bytes of HBM traffic per position.
    cost = pl.CostEstimate(
        flops=int(38 * N * nl * 128),
        transcendentals=0,
        bytes_accessed=int(12 * N * nl * 128),
    )

    comp_kwargs = dict(dimension_semantics=("parallel", "parallel"))
    if bn * ts > 2048:
        # Above ~2048 rows/step the double-buffered working set can exceed the
        # v5e 16 MiB scoped-VMEM default; raise it explicitly (kept well under
        # v7x's 64 MiB physical VMEM).
        comp_kwargs["vmem_limit_bytes"] = min(
            48 << 20, int(4 * bn * ts * 128 * 4 * 3) + (4 << 20))

    out4d = pl.pallas_call(
        cade_kernel,
        out_shape=jax.ShapeDtypeStruct((N, 1, nl, 128), jnp.float32),
        grid_spec=pltpu.PrefetchScalarGridSpec(
            num_scalar_prefetch=0,
            grid=grid,
            in_specs=[
                # 92-byte param vector: single SMEM-resident input (proven
                # path; scalar-prefetch would be equivalent here).
                pl.BlockSpec(memory_space=pltpu.MemorySpace.SMEM),
                pl.BlockSpec((bn, 2, ts, 128), lambda n, l: (n, 0, l, 0)),
            ],
            out_specs=pl.BlockSpec((bn, 1, ts, 128), lambda n, l: (n, 0, l, 0)),
        ),
        compiler_params=pltpu.CompilerParams(**comp_kwargs),
        cost_estimate=cost,
    )(packed, x4d)

    if l_pad != L:
        # Lane-pad tail positions are computed but discarded here.
        return out4d.reshape(N, l_pad)[:, :L].reshape(-1)
    return out4d.reshape(-1)                           # (N*L,)


# ----------------------------------------------------------------------------
# Pure-JAX reference (unfused, eval-mode BN) for correctness checking.
# ----------------------------------------------------------------------------
def cade_reference(x_ncl, p):
    x = x_ncl.astype(jnp.float32)

    def conv1x1(h, w, b):
        return jnp.einsum("oi,nil->nol", w, h) + b[None, :, None]

    def bn(h, g, be, rm, rv):
        return ((h - rm[None, :, None]) * lax.rsqrt(rv[None, :, None] + BN_EPS)
                * g[None, :, None] + be[None, :, None])

    h = jnp.maximum(bn(conv1x1(x, p["w1"], p["b1"]),
                       p["g1"], p["be1"], p["rm1"], p["rv1"]), 0.0)
    h = jnp.maximum(bn(conv1x1(h, p["w2"], p["b2"]),
                       p["g2"], p["be2"], p["rm2"], p["rv2"]), 0.0)
    out = conv1x1(h, p["w5"], p["b5"])
    return out.reshape(-1)


if __name__ == "__main__":
    key = jax.random.PRNGKey(0)
    k1, k2, k3, k_p = jax.random.split(key, 4)
    params = init_params(k_p)

    # Case 1: L a multiple of 128, exercises the ts-split / no-pad path.
    N, L = 2, 2048
    x = jax.random.normal(k1, (N, 2, L), jnp.float32)
    out = jax.block_until_ready(cade_forward(x, params))
    ref = cade_reference(x, params)
    assert out.shape == (N * L,)
    assert jnp.allclose(out, ref, atol=1e-4, rtol=1e-4), "mismatch (case 1)"

    # Case 2: ragged L exercises the 128-pad + tail-discard path.
    N2, L2 = 3, 200
    x2 = jax.random.normal(k2, (N2, 2, L2), jnp.float32)
    out2 = jax.block_until_ready(cade_forward(x2, params))
    ref2 = cade_reference(x2, params)
    assert out2.shape == (N2 * L2,)
    assert jnp.allclose(out2, ref2, atol=1e-4, rtol=1e-4), "mismatch (case 2)"

    # Case 3: small L, larger N exercises batch blocking with a partial
    # trailing block along N.
    N3, L3 = 10, 256
    x3 = jax.random.normal(k3, (N3, 2, L3), jnp.float32)
    out3 = jax.block_until_ready(cade_forward(x3, params))
    ref3 = cade_reference(x3, params)
    assert out3.shape == (N3 * L3,)
    assert jnp.allclose(out3, ref3, atol=1e-4, rtol=1e-4), "mismatch (case 3)"

    print("KERNEL_OK")
</pallas_src>

<mosaic_0001>
module attributes {stable_mosaic.version = 11 : i64} {
  func.func @cade_kernel(%arg0: i32, %arg1: i32, %arg2: memref<23xf32, #tpu.memory_space<smem>>, %arg3: memref<1x2x8x128xf32, #tpu.memory_space<vmem>>, %arg4: memref<1x1x8x128xf32, #tpu.memory_space<vmem>>) attributes {dimension_semantics = [#tpu.dimension_semantics<parallel>, #tpu.dimension_semantics<parallel>], iteration_bounds = array<i64: 2, 2>, scalar_prefetch = 0 : i64, scratch_operands = 0 : i64, tpu.core_type = #tpu.core_type<tc>, window_params = [{transform_indices = @transform_0, window_bounds = array<i64: 23>}, {transform_indices = @transform_1, window_bounds = array<i64: 1, 2, 8, 128>}, {transform_indices = @transform_2, window_bounds = array<i64: 1, 1, 8, 128>}]} {
    %c0 = arith.constant 0 : index
    %c0_0 = arith.constant 0 : index
    %c0_1 = arith.constant 0 : index
    %c0_2 = arith.constant 0 : index
    %0 = vector.load %arg3[%c0, %c0_0, %c0_1, %c0_2] : memref<1x2x8x128xf32, #tpu.memory_space<vmem>>, vector<1x1x8x128xf32>
    %1 = vector.shape_cast %0 : vector<1x1x8x128xf32> to vector<1x8x128xf32>
    %c0_3 = arith.constant 0 : index
    %c1 = arith.constant 1 : index
    %c0_4 = arith.constant 0 : index
    %c0_5 = arith.constant 0 : index
    %2 = vector.load %arg3[%c0_3, %c1, %c0_4, %c0_5] : memref<1x2x8x128xf32, #tpu.memory_space<vmem>>, vector<1x1x8x128xf32>
    %3 = vector.shape_cast %2 : vector<1x1x8x128xf32> to vector<1x8x128xf32>
    %c0_6 = arith.constant 0 : index
    %4 = memref.load %arg2[%c0_6] : memref<23xf32, #tpu.memory_space<smem>>
    %5 = vector.broadcast %4 : f32 to vector<1x8x128xf32>
    %6 = arith.mulf %5, %1 : vector<1x8x128xf32>
    %c1_7 = arith.constant 1 : index
    %7 = memref.load %arg2[%c1_7] : memref<23xf32, #tpu.memory_space<smem>>
    %8 = vector.broadcast %7 : f32 to vector<1x8x128xf32>
    %9 = arith.mulf %8, %3 : vector<1x8x128xf32>
    %10 = arith.addf %6, %9 : vector<1x8x128xf32>
    %c2 = arith.constant 2 : index
    %11 = memref.load %arg2[%c2] : memref<23xf32, #tpu.memory_space<smem>>
    %12 = vector.broadcast %11 : f32 to vector<1x8x128xf32>
    %13 = arith.addf %10, %12 : vector<1x8x128xf32>
    %cst = arith.constant 0.000000e+00 : f32
    %14 = vector.broadcast %cst : f32 to vector<1x8x128xf32>
    %15 = arith.maximumf %13, %14 : vector<1x8x128xf32>
    %c3 = arith.constant 3 : index
    %16 = memref.load %arg2[%c3] : memref<23xf32, #tpu.memory_space<smem>>
    %17 = vector.broadcast %16 : f32 to vector<1x8x128xf32>
    %18 = arith.mulf %17, %1 : vector<1x8x128xf32>
    %c4 = arith.constant 4 : index
    %19 = memref.load %arg2[%c4] : memref<23xf32, #tpu.memory_space<smem>>
    %20 = vector.broadcast %19 : f32 to vector<1x8x128xf32>
    %21 = arith.mulf %20, %3 : vector<1x8x128xf32>
    %22 = arith.addf %18, %21 : vector<1x8x128xf32>
    %c5 = arith.constant 5 : index
    %23 = memref.load %arg2[%c5] : memref<23xf32, #tpu.memory_space<smem>>
    %24 = vector.broadcast %23 : f32 to vector<1x8x128xf32>
    %25 = arith.addf %22, %24 : vector<1x8x128xf32>
    %cst_8 = arith.constant 0.000000e+00 : f32
    %26 = vector.broadcast %cst_8 : f32 to vector<1x8x128xf32>
    %27 = arith.maximumf %25, %26 : vector<1x8x128xf32>
    %c18 = arith.constant 18 : index
    %28 = memref.load %arg2[%c18] : memref<23xf32, #tpu.memory_space<smem>>
    %c6 = arith.constant 6 : index
    %29 = memref.load %arg2[%c6] : memref<23xf32, #tpu.memory_space<smem>>
    %30 = vector.broadcast %29 : f32 to vector<1x8x128xf32>
    %31 = arith.mulf %30, %15 : vector<1x8x128xf32>
    %c7 = arith.constant 7 : index
    %32 = memref.load %arg2[%c7] : memref<23xf32, #tpu.memory_space<smem>>
    %33 = vector.broadcast %32 : f32 to vector<1x8x128xf32>
    %34 = arith.mulf %33, %27 : vector<1x8x128xf32>
    %35 = arith.addf %31, %34 : vector<1x8x128xf32>
    %c8 = arith.constant 8 : index
    %36 = memref.load %arg2[%c8] : memref<23xf32, #tpu.memory_space<smem>>
    %37 = vector.broadcast %36 : f32 to vector<1x8x128xf32>
    %38 = arith.addf %35, %37 : vector<1x8x128xf32>
    %cst_9 = arith.constant 0.000000e+00 : f32
    %39 = vector.broadcast %cst_9 : f32 to vector<1x8x128xf32>
    %40 = arith.maximumf %38, %39 : vector<1x8x128xf32>
    %41 = vector.broadcast %28 : f32 to vector<1x8x128xf32>
    %42 = arith.mulf %41, %40 : vector<1x8x128xf32>
    %c19 = arith.constant 19 : index
    %43 = memref.load %arg2[%c19] : memref<23xf32, #tpu.memory_space<smem>>
    %c9 = arith.constant 9 : index
    %44 = memref.load %arg2[%c9] : memref<23xf32, #tpu.memory_space<smem>>
    %45 = vector.broadcast %44 : f32 to vector<1x8x128xf32>
    %46 = arith.mulf %45, %15 : vector<1x8x128xf32>
    %c10 = arith.constant 10 : index
    %47 = memref.load %arg2[%c10] : memref<23xf32, #tpu.memory_space<smem>>
    %48 = vector.broadcast %47 : f32 to vector<1x8x128xf32>
    %49 = arith.mulf %48, %27 : vector<1x8x128xf32>
    %50 = arith.addf %46, %49 : vector<1x8x128xf32>
    %c11 = arith.constant 11 : index
    %51 = memref.load %arg2[%c11] : memref<23xf32, #tpu.memory_space<smem>>
    %52 = vector.broadcast %51 : f32 to vector<1x8x128xf32>
    %53 = arith.addf %50, %52 : vector<1x8x128xf32>
    %cst_10 = arith.constant 0.000000e+00 : f32
    %54 = vector.broadcast %cst_10 : f32 to vector<1x8x128xf32>
    %55 = arith.maximumf %53, %54 : vector<1x8x128xf32>
    %56 = vector.broadcast %43 : f32 to vector<1x8x128xf32>
    %57 = arith.mulf %56, %55 : vector<1x8x128xf32>
    %58 = arith.addf %42, %57 : vector<1x8x128xf32>
    %c20 = arith.constant 20 : index
    %59 = memref.load %arg2[%c20] : memref<23xf32, #tpu.memory_space<smem>>
    %c12 = arith.constant 12 : index
    %60 = memref.load %arg2[%c12] : memref<23xf32, #tpu.memory_space<smem>>
    %61 = vector.broadcast %60 : f32 to vector<1x8x128xf32>
    %62 = arith.mulf %61, %15 : vector<1x8x128xf32>
    %c13 = arith.constant 13 : index
    %63 = memref.load %arg2[%c13] : memref<23xf32, #tpu.memory_space<smem>>
    %64 = vector.broadcast %63 : f32 to vector<1x8x128xf32>
    %65 = arith.mulf %64, %27 : vector<1x8x128xf32>
    %66 = arith.addf %62, %65 : vector<1x8x128xf32>
    %c14 = arith.constant 14 : index
    %67 = memref.load %arg2[%c14] : memref<23xf32, #tpu.memory_space<smem>>
    %68 = vector.broadcast %67 : f32 to vector<1x8x128xf32>
    %69 = arith.addf %66, %68 : vector<1x8x128xf32>
    %cst_11 = arith.constant 0.000000e+00 : f32
    %70 = vector.broadcast %cst_11 : f32 to vector<1x8x128xf32>
    %71 = arith.maximumf %69, %70 : vector<1x8x128xf32>
    %72 = vector.broadcast %59 : f32 to vector<1x8x128xf32>
    %73 = arith.mulf %72, %71 : vector<1x8x128xf32>
    %74 = arith.addf %58, %73 : vector<1x8x128xf32>
    %c21 = arith.constant 21 : index
    %75 = memref.load %arg2[%c21] : memref<23xf32, #tpu.memory_space<smem>>
    %c15 = arith.constant 15 : index
    %76 = memref.load %arg2[%c15] : memref<23xf32, #tpu.memory_space<smem>>
    %77 = vector.broadcast %76 : f32 to vector<1x8x128xf32>
    %78 = arith.mulf %77, %15 : vector<1x8x128xf32>
    %c16 = arith.constant 16 : index
    %79 = memref.load %arg2[%c16] : memref<23xf32, #tpu.memory_space<smem>>
    %80 = vector.broadcast %79 : f32 to vector<1x8x128xf32>
    %81 = arith.mulf %80, %27 : vector<1x8x128xf32>
    %82 = arith.addf %78, %81 : vector<1x8x128xf32>
    %c17 = arith.constant 17 : index
    %83 = memref.load %arg2[%c17] : memref<23xf32, #tpu.memory_space<smem>>
    %84 = vector.broadcast %83 : f32 to vector<1x8x128xf32>
    %85 = arith.addf %82, %84 : vector<1x8x128xf32>
    %cst_12 = arith.constant 0.000000e+00 : f32
    %86 = vector.broadcast %cst_12 : f32 to vector<1x8x128xf32>
    %87 = arith.maximumf %85, %86 : vector<1x8x128xf32>
    %88 = vector.broadcast %75 : f32 to vector<1x8x128xf32>
    %89 = arith.mulf %88, %87 : vector<1x8x128xf32>
    %90 = arith.addf %74, %89 : vector<1x8x128xf32>
    %c22 = arith.constant 22 : index
    %91 = memref.load %arg2[%c22] : memref<23xf32, #tpu.memory_space<smem>>
    %92 = vector.broadcast %91 : f32 to vector<1x8x128xf32>
    %93 = arith.addf %90, %92 : vector<1x8x128xf32>
    %c0_13 = arith.constant 0 : index
    %c0_14 = arith.constant 0 : index
    %c0_15 = arith.constant 0 : index
    %c0_16 = arith.constant 0 : index
    %94 = vector.load %arg4[%c0_13, %c0_14, %c0_15, %c0_16] : memref<1x1x8x128xf32, #tpu.memory_space<vmem>>, vector<1x1x8x128xf32>
    %95 = vector.shape_cast %94 : vector<1x1x8x128xf32> to vector<1x8x128xf32>
    %96 = vector.shape_cast %93 : vector<1x8x128xf32> to vector<1x1x8x128xf32>
    tpu.vector_store %arg4[%c0_13, %c0_14, %c0_15, %c0_16], %96 {strides = array<i32>} : memref<1x1x8x128xf32, #tpu.memory_space<vmem>>, vector<1x1x8x128xf32>,
    return
  }
  func.func @transform_0(%arg0: i32, %arg1: i32) -> i32 {
    %c0_i32 = arith.constant 0 : i32
    %c0_i32_0 = arith.constant 0 : i32
    return %c0_i32 : i32
  }
  func.func @transform_1(%arg0: i32, %arg1: i32) -> (i32, i32, i32, i32) {
    %c0_i32 = arith.constant 0 : i32
    %c0_i32_0 = arith.constant 0 : i32
    %c0_i32_1 = arith.constant 0 : i32
    return %arg0, %c0_i32, %arg1, %c0_i32_0 : i32, i32, i32, i32
  }
  func.func @transform_2(%arg0: i32, %arg1: i32) -> (i32, i32, i32, i32) {
    %c0_i32 = arith.constant 0 : i32
    %c0_i32_0 = arith.constant 0 : i32
    %c0_i32_1 = arith.constant 0 : i32
    return %arg0, %c0_i32, %arg1, %c0_i32_0 : i32, i32, i32, i32
  }
}

</mosaic_0001>

<llo_original>
// kernel: tpu_custom_call.1
$region0: #{tpu_custom_call.1}
  #allocation0 [shape = 'u32[]', space=smem, size = 0x4, offset = 0x4, fixed_abs, tag = 'smem constant byte address 0x4 - core index']
  #allocation1 [shape = 'u32[72,128]{1,0:T(1,128)}', space=vmem, size = 0x9000, scoped, tag = 'internal scratch']
  %s0 = inlined_call_operand.hbm [shape: f32[23], index: 0, kind: input, shape index: {}]
  %s1 = inlined_call_operand.hbm [shape: f32[2,2,16,128], index: 1, kind: input, shape index: {}]
  %s2 = inlined_call_operand.hbm [shape: f32[2,1,16,128], index: 2, kind: output, shape index: {}]
  %s3 = sld [smem:[#allocation0]]
  $region49: #{tpu_custom_call.1} parent=0
    _
  %s5 = ssub.s32 1, %s3
  %s6 = scalar_select 0, %s5, %s3
  $region1: #{tpu_custom_call.1} parent=0
    #allocation2 [shape = 'u8[512]{0}', space=smem, size = 0x200, scoped, tag = 'input window, operand 0, single buffered']
    #allocation3 [shape = 's32[2]{0}', space=sflag, size = 0x8, scoped, tag = 'scoped memory for tpu_custom_call.1']
    #allocation4 [shape = 's32[2]{0}', space=sflag, size = 0x8, scoped, tag = 'scoped memory for tpu_custom_call.1']
    #allocation5 [shape = 's32[2]{0}', space=sflag, size = 0x8, scoped, tag = 'scoped memory for tpu_custom_call.1']
    #allocation6 [shape = 'u8[16384]{0}', space=vmem, size = 0x4000, scoped, tag = 'input window, operand 1']
    #allocation7 [shape = 'u8[8192]{0}', space=vmem, size = 0x2000, scoped, tag = 'output window, operand 0']
    %7 = vsyncpa [#allocation5], 0
    %8 = vsyncpa [#allocation3], 0
    %s9 = scalar_lea.sflag [#allocation3], 1
    %10 = vsyncpa %s9, 0
    %11 = vsyncpa [#allocation4], 0
    %s12 = scalar_lea.sflag [#allocation4], 1
    %13 = vsyncpa %s12, 0
    loop: start=0, step=1, limit=6
    $region2: #{tpu_custom_call.1} parent=1 // loop_pre_header
      _
    $region3: #{tpu_custom_call.1} parent=1 // loop_header
      %s15 = sphi 0, %s19
      %p16 = scmp.ge.s32.totalorder %s15, 6
      %s22 = sphi 0, %s34
      %s23 = sphi 0, %s30
      %s24 = sphi 0, %s22
      %s25 = sphi 0, %s23
      %s26 = sphi 0, %s24
      %s27 = sphi 0, %s25
      %s35 = sphi 0, %s35
      %s37 = sphi 0, %s35
      %s38 = sphi 0, %s37
      %s52 = sphi 0, %s38
      %s60 = sphi 0, %s62
      %s63 = sphi 0, %s60
      %s64 = sphi 0, %s63
      %s80 = sphi 0, %s64
      %s88 = sphi 0, %s90
      %s91 = sphi 0, %s88
      %s92 = sphi 0, %s91
      %s108 = sphi 0, %s92
    $region4: #{tpu_custom_call.1} parent=1 // loop_header_branch
      %18 = sbr.rel (%p16) target = $region8
    $region5: #{tpu_custom_call.1} parent=1 // loop_body
      %s20 = ssub.s32 %s15, 1
      %s21 = ssub.s32 %s15, 2
      %s28 = sadd.s32 1, %s23
      %p29 = scmp.ge.s32.totalorder %s28, 2
      %s30 = scalar_select %p29, 0, %s28
      %s31 = sadd.s32 1, %s22
      %s32 = scalar_select %p29, %s31, %s22
      %p33 = scmp.ge.s32.totalorder %s32, 2
      %s34 = scalar_select %p33, 0, %s32
      %s36 = sadd.s32 %s35, 1
      %p39 = scmp.eq.s32.totalorder %s15, 3
      %p40 = scmp.ne.s32.totalorder %s35, %s37
      %p41 = scmp.eq.s32.totalorder %s15, 0
      %p42 = por %p40, %p41
      %p43 = scmp.ne.s32.totalorder %s35, %s37
      %p44 = scmp.eq.s32.totalorder %s20, 3
      %p45 = por %p43, %p44
      %p46 = scmp.ne.s32.totalorder %s37, %s38
      %p47 = scmp.eq.s32.totalorder %s20, 0
      %p48 = por %p46, %p47
      %p49 = scmp.ne.s32.totalorder %s37, %s38
      %p50 = scmp.eq.s32.totalorder %s21, 3
      %p51 = por %p49, %p50
      %p53 = scmp.ne.s32.totalorder %s38, %s52
      %p54 = scmp.eq.s32.totalorder %s21, 0
      %p55 = por %p53, %p54
      %s56 = ssub.s32 %s22, %s34
      %s57 = ssub.s32 %s23, %s30
      %s58 = sor.u32 %s56, %s57
      %p59 = scmp.eq.s32.totalorder %s58, 0
      %s61 = sadd.s32 %s60, 1
      %s62 = scalar_select %p59, %s60, %s61
      %p65 = pneg %p59
      %p66 = scmp.eq.s32.totalorder %s15, 3
      %p67 = por %p65, %p66
      %p68 = scmp.ne.s32.totalorder %s60, %s63
      %p69 = scmp.eq.s32.totalorder %s15, 0
      %p70 = por %p68, %p69
      %p71 = scmp.ne.s32.totalorder %s60, %s63
      %p72 = scmp.eq.s32.totalorder %s20, 3
      %p73 = por %p71, %p72
      %p74 = scmp.ne.s32.totalorder %s63, %s64
      %p75 = scmp.eq.s32.totalorder %s20, 0
      %p76 = por %p74, %p75
      %p77 = scmp.ne.s32.totalorder %s63, %s64
      %p78 = scmp.eq.s32.totalorder %s21, 3
      %p79 = por %p77, %p78
      %p81 = scmp.ne.s32.totalorder %s64, %s80
      %p82 = scmp.eq.s32.totalorder %s21, 0
      %p83 = por %p81, %p82
      %s84 = ssub.s32 %s22, %s34
      %s85 = ssub.s32 %s23, %s30
      %s86 = sor.u32 %s84, %s85
      %p87 = scmp.eq.s32.totalorder %s86, 0
      %s89 = sadd.s32 %s88, 1
      %s90 = scalar_select %p87, %s88, %s89
      %p93 = pneg %p87
      %p94 = scmp.eq.s32.totalorder %s15, 3
      %p95 = por %p93, %p94
      %p96 = scmp.ne.s32.totalorder %s88, %s91
      %p97 = scmp.eq.s32.totalorder %s15, 0
      %p98 = por %p96, %p97
      %p99 = scmp.ne.s32.totalorder %s88, %s91
      %p100 = scmp.eq.s32.totalorder %s20, 3
      %p101 = por %p99, %p100
      %p102 = scmp.ne.s32.totalorder %s91, %s92
      %p103 = scmp.eq.s32.totalorder %s20, 0
      %p104 = por %p102, %p103
      %p105 = scmp.ne.s32.totalorder %s91, %s92
      %p106 = scmp.eq.s32.totalorder %s21, 3
      %p107 = por %p105, %p106
      %p109 = scmp.ne.s32.totalorder %s92, %s108
      %p110 = scmp.eq.s32.totalorder %s21, 0
      %p111 = por %p109, %p110
      %p112 = scmp.le.s32.totalorder 1, %s15
      %p113 = scmp.lt.s32.totalorder %s15, 5
      %p114 = pnand %p112, %p113
      %p115 = pneg %p114
      // Predicated region
      $region9: #{tpu_custom_call.1} parent=5 // pred_check
        _
      $region10: #{tpu_custom_call.1} parent=5 // pred_check_branch
        %117 = sbr.rel (%p114) target = $region12
      $region11: #{tpu_custom_call.1} parent=5 // pred_region
        %s118 = ssub.s32 %s15, 1
        // Predicated region
        $region13: #{tpu_custom_call.1} parent=11 // pred_check
          %p119 = pneg %p48
        $region14: #{tpu_custom_call.1} parent=11 // pred_check_branch
          %121 = sbr.rel (%p119) target = $region16
        $region15: #{tpu_custom_call.1} parent=11 // pred_region
          %123 = vsyncadd [#allocation5], 0
          %s125 = sshll.u32 %s0, 4
          %s126 = int_to_ptr.hbm [resolvable:$true] %s125
          %128 = dma.hbm_to_smem %s126, 16, [#allocation2], [#allocation5]
        $region16: #{tpu_custom_call.1} parent=11 // pred_fallthru
          _
      $region12: #{tpu_custom_call.1} parent=5 // pred_fallthru
        _
      %p129 = scmp.lt.s32.totalorder %s15, 4
      // Predicated region
      $region17: #{tpu_custom_call.1} parent=5 // pred_check
        %p130 = pneg %p129
      $region18: #{tpu_custom_call.1} parent=5 // pred_check_branch
        %132 = sbr.rel (%p130) target = $region20
      $region19: #{tpu_custom_call.1} parent=5 // pred_region
        // Predicated region
        $region21: #{tpu_custom_call.1} parent=19 // pred_check
          %p133 = pneg %p70
        $region22: #{tpu_custom_call.1} parent=19 // pred_check_branch
          %135 = sbr.rel (%p133) target = $region24
        $region23: #{tpu_custom_call.1} parent=19 // pred_region
          %s136 = sand.u32 %s60, 1
          %s137 = scalar_lea.sflag [#allocation3], %s136
          %s138 = sand.u32 %s60, 1
          %s139 = smul.addr %s138, 16
          %s140 = scalar_lea.vmem [#allocation6], %s139
          %142 = vsyncadd %s137, 0
          %s143 = smul.addr %s22, 4
          %s144 = sadd.s32 %s23, %s143
          %s145 = smul.addr %s144, 8
          %s146 = scalar_lea.hbm %s1, %s145
          %s147 = sshll.u32 %s146, 4
          %s148 = int_to_ptr.hbm [resolvable:$true] %s147
          %s149 = sshll.u32 %s140, 4
          %s150 = int_to_ptr.vmem [resolvable:$true] %s149
          %155 = dma.hbm_to_vmem [thread:$0]  %s148, 256, %s150, %s137, 256, 128, 8
        $region24: #{tpu_custom_call.1} parent=19 // pred_fallthru
          _
      $region20: #{tpu_custom_call.1} parent=5 // pred_fallthru
        _
      %p156 = scmp.le.s32.totalorder 1, %s15
      %p157 = scmp.lt.s32.totalorder %s15, 5
      %p158 = pnand %p156, %p157
      %p159 = pneg %p158
      // Predicated region
      $region25: #{tpu_custom_call.1} parent=5 // pred_check
        _
      $region26: #{tpu_custom_call.1} parent=5 // pred_check_branch
        %161 = sbr.rel (%p158) target = $region28
      $region27: #{tpu_custom_call.1} parent=5 // pred_region
        %s162 = ssub.s32 %s15, 1
        // Predicated region
        $region29: #{tpu_custom_call.1} parent=27 // pred_check
          %p163 = pneg %p48
        $region30: #{tpu_custom_call.1} parent=27 // pred_check_branch
          %165 = sbr.rel (%p163) target = $region32
        $region31: #{tpu_custom_call.1} parent=27 // pred_region
          %167 = dma.done [#allocation5], 16
        $region32: #{tpu_custom_call.1} parent=27 // pred_fallthru
          _
        %s168 = sand.u32 %s63, 1
        %s169 = scalar_lea.sflag [#allocation3], %s168
        %s170 = sand.u32 %s63, 1
        %s171 = smul.addr %s170, 16
        %s172 = scalar_lea.vmem [#allocation6], %s171
        // Predicated region
        $region33: #{tpu_custom_call.1} parent=27 // pred_check
          %p173 = pneg %p76
        $region34: #{tpu_custom_call.1} parent=27 // pred_check_branch
          %175 = sbr.rel (%p173) target = $region36
        $region35: #{tpu_custom_call.1} parent=27 // pred_region
          %177 = dma.done %s169, 256
        $region36: #{tpu_custom_call.1} parent=27 // pred_fallthru
          _
        %178 = sfence
        %p179 = pneg %p48
        %p180 = pneg %p45
        %s181 = sand.u32 %s63, 1
        %s182 = scalar_lea.sflag [#allocation3], %s181
        %s183 = sand.u32 %s63, 1
        %s184 = smul.addr %s183, 16
        %s185 = scalar_lea.vmem [#allocation6], %s184
        %p186 = pneg %p76
        %p187 = pneg %p73
        %p188 = pneg %p104
        %p189 = pneg %p101
        %s190 = sand.u32 %s91, 1
        %s191 = scalar_lea.sflag [#allocation4], %s190
        %s192 = sand.u32 %s91, 1
        %s193 = smul.addr %s192, 8
        %s194 = scalar_lea.vmem [#allocation7], %s193
        %v195 = vld [vmem:[%s172] sm:$0xff]
        %s196 = scalar_lea.vmem %s172, 8 [#allocation6]
        %v197 = vld [vmem:[%s196] sm:$0xff]
        %s198 = sld [smem:[#allocation2]]
        %v199 = vstv %s198
        %v200 = vmul.f32 %v199, %v195
        %s201 = sld [smem:[#allocation2 + $0x1]]
        %v202 = vstv %s201
        %v203 = vmul.f32 %v202, %v197
        %v204 = vadd.f32 %v200, %v203
        %s205 = sld [smem:[#allocation2 + $0x2]]
        %v206 = vstv %s205
        %v207 = vadd.f32 %v204, %v206
        %v208 = vmax.f32 %v207, 0.0
        %s209 = sld [smem:[#allocation2 + $0x3]]
        %v210 = vstv %s209
        %v211 = vmul.f32 %v210, %v195
        %s212 = sld [smem:[#allocation2 + $0x4]]
        %v213 = vstv %s212
        %v214 = vmul.f32 %v213, %v197
        %v215 = vadd.f32 %v211, %v214
        %s216 = sld [smem:[#allocation2 + $0x5]]
        %v217 = vstv %s216
        %v218 = vadd.f32 %v215, %v217
        %v219 = vmax.f32 %v218, 0.0
        %s220 = sld [smem:[#allocation2 + $0x12]]
        %s221 = sld [smem:[#allocation2 + $0x6]]
        %v222 = vstv %s221
        %v223 = vmul.f32 %v222, %v208
        %s224 = sld [smem:[#allocation2 + $0x7]]
        %v225 = vstv %s224
        %v226 = vmul.f32 %v225, %v219
        %v227 = vadd.f32 %v223, %v226
        %s228 = sld [smem:[#allocation2 + $0x8]]
        %v229 = vstv %s228
        %v230 = vadd.f32 %v227, %v229
        %v231 = vmax.f32 %v230, 0.0
        %v232 = vstv %s220
        %v233 = vmul.f32 %v232, %v231
        %s234 = sld [smem:[#allocation2 + $0x13]]
        %s235 = sld [smem:[#allocation2 + $0x9]]
        %v236 = vstv %s235
        %v237 = vmul.f32 %v236, %v208
        %s238 = sld [smem:[#allocation2 + $0xa]]
        %v239 = vstv %s238
        %v240 = vmul.f32 %v239, %v219
        %v241 = vadd.f32 %v237, %v240
        %s242 = sld [smem:[#allocation2 + $0xb]]
        %v243 = vstv %s242
        %v244 = vadd.f32 %v241, %v243
        %v245 = vmax.f32 %v244, 0.0
        %v246 = vstv %s234
        %v247 = vmul.f32 %v246, %v245
        %v248 = vadd.f32 %v233, %v247
        %s249 = sld [smem:[#allocation2 + $0x14]]
        %s250 = sld [smem:[#allocation2 + $0xc]]
        %v251 = vstv %s250
        %v252 = vmul.f32 %v251, %v208
        %s253 = sld [smem:[#allocation2 + $0xd]]
        %v254 = vstv %s253
        %v255 = vmul.f32 %v254, %v219
        %v256 = vadd.f32 %v252, %v255
        %s257 = sld [smem:[#allocation2 + $0xe]]
        %v258 = vstv %s257
        %v259 = vadd.f32 %v256, %v258
        %v260 = vmax.f32 %v259, 0.0
        %v261 = vstv %s249
        %v262 = vmul.f32 %v261, %v260
        %v263 = vadd.f32 %v248, %v262
        %s264 = sld [smem:[#allocation2 + $0x15]]
        %s265 = sld [smem:[#allocation2 + $0xf]]
        %v266 = vstv %s265
        %v267 = vmul.f32 %v266, %v208
        %s268 = sld [smem:[#allocation2 + $0x10]]
        %v269 = vstv %s268
        %v270 = vmul.f32 %v269, %v219
        %v271 = vadd.f32 %v267, %v270
        %s272 = sld [smem:[#allocation2 + $0x11]]
        %v273 = vstv %s272
        %v274 = vadd.f32 %v271, %v273
        %v275 = vmax.f32 %v274, 0.0
        %v276 = vstv %s264
        %v277 = vmul.f32 %v276, %v275
        %v278 = vadd.f32 %v263, %v277
        %s279 = sld [smem:[#allocation2 + $0x16]]
        %v280 = vstv %s279
        %v281 = vadd.f32 %v278, %v280
        %282 = vst [vmem:[%s194] sm:$0xff] %v281
        %s283 = sand.u32 %s91, 1
        %s284 = scalar_lea.sflag [#allocation4], %s283
        %s285 = sand.u32 %s91, 1
        %s286 = smul.addr %s285, 8
        %s287 = scalar_lea.vmem [#allocation7], %s286
        // Predicated region
        $region37: #{tpu_custom_call.1} parent=27 // pred_check
          %p288 = pneg %p101
        $region38: #{tpu_custom_call.1} parent=27 // pred_check_branch
          %290 = sbr.rel (%p288) target = $region40
        $region39: #{tpu_custom_call.1} parent=27 // pred_region
          %292 = vsyncadd %s284, 0
          %s293 = smul.addr %s24, 2
          %s294 = sadd.s32 %s25, %s293
          %s295 = smul.addr %s294, 8
          %s296 = scalar_lea.hbm %s2, %s295
          %s298 = sshll.u32 %s287, 4
          %s299 = int_to_ptr.vmem [resolvable:$true] %s298
          %s300 = sshll.u32 %s296, 4
          %s301 = int_to_ptr.hbm [resolvable:$true] %s300
          %303 = dma.vmem_to_hbm [thread:$0]  %s299, 128, %s301, %s284
        $region40: #{tpu_custom_call.1} parent=27 // pred_fallthru
          _
      $region28: #{tpu_custom_call.1} parent=5 // pred_fallthru
        _
      %p304 = scmp.le.s32.totalorder 2, %s15
      // Predicated region
      $region41: #{tpu_custom_call.1} parent=5 // pred_check
        %p305 = pneg %p304
      $region42: #{tpu_custom_call.1} parent=5 // pred_check_branch
        %307 = sbr.rel (%p305) target = $region44
      $region43: #{tpu_custom_call.1} parent=5 // pred_region
        %s308 = ssub.s32 %s15, 2
        // Predicated region
        $region45: #{tpu_custom_call.1} parent=43 // pred_check
          %p309 = pneg %p107
        $region46: #{tpu_custom_call.1} parent=43 // pred_check_branch
          %311 = sbr.rel (%p309) target = $region48
        $region47: #{tpu_custom_call.1} parent=43 // pred_region
          %s312 = sand.u32 %s92, 1
          %s313 = scalar_lea.sflag [#allocation4], %s312
          %s314 = sand.u32 %s92, 1
          %s315 = smul.addr %s314, 8
          %s316 = scalar_lea.vmem [#allocation7], %s315
          %318 = dma.done %s313, 128
        $region48: #{tpu_custom_call.1} parent=43 // pred_fallthru
          _
      $region44: #{tpu_custom_call.1} parent=5 // pred_fallthru
        _
    $region6: #{tpu_custom_call.1} parent=1 // loop_footer
      %s19 = sadd.s32 1, %s15
    $region7: #{tpu_custom_call.1} parent=1 // loop_footer_branch
      %14 = sbr.rel target = $region3
    $region8: #{tpu_custom_call.1} parent=1 // loop_exit
      _
    %319 = vsyncpa [#allocation3], 1
    %s320 = scalar_lea.sflag [#allocation3], 1
    %321 = vsyncpa %s320, 1
    %322 = vsyncpa [#allocation4], 1
    %s323 = scalar_lea.sflag [#allocation4], 1
    %324 = vsyncpa %s323, 1
    %325 = vsyncpa [#allocation5], 1
    %s326 = scalar_lea.sflag [#allocation5], 1
    %327 = vsyncpa %s326, 1

</llo_original>
